<compile_context>
chip_gen: v5e
topology: v5e:2x2
jax: 0.10.0
libtpu: 0.0.40
codegen_flags: <defaults>
</compile_context>

<pallas_src>
import jax
import jax.numpy as jnp
from jax.experimental import pallas as pl
from jax.experimental.pallas import tpu as pltpu


def _round_up(x, m):
    return ((x + m - 1) // m) * m


def _collect_kernel(attn_ref, src_ref, w_ref, b_ref, out_ref, fc_ref):
    # Compute fc_out = relu(source @ W + b) once; it persists in VMEM scratch
    # across all subsequent (sequential, "arbitrary") grid steps.
    @pl.when(pl.program_id(0) == 0)
    def _():
        fc = jnp.dot(src_ref[...], w_ref[...],
                     preferred_element_type=jnp.float32)
        fc_ref[...] = jnp.maximum(fc + b_ref[...], 0.0)

    attn = attn_ref[...]
    collect = jnp.dot(attn, fc_ref[...], preferred_element_type=jnp.float32)
    denom = jnp.sum(attn, axis=1, keepdims=True) + 1e-7
    out_ref[...] = (collect / denom).astype(out_ref.dtype)


def collection_unit_forward(source, attention, weight, bias):
    """Pallas implementation of _Collection_Unit.forward.

    source:    (M, dim_in)
    attention: (N, M)
    weight:    (dim_out, dim_in)   (PyTorch nn.Linear layout)
    bias:      (dim_out,)
    returns:   (N, dim_out)
    """
    N, M = attention.shape
    Ms, Din = source.shape
    Dout, Din_w = weight.shape
    assert Ms == M, "attention columns must match source rows"
    assert Din_w == Din, "weight dim_in must match source feature dim"
    dtype = source.dtype

    # Lane-dense padding: last dims -> multiples of 128, rows -> multiples of 8.
    Mp = _round_up(M, 128)
    Dinp = _round_up(Din, 128)
    Doutp = _round_up(Dout, 128)

    # Row tile of the output (attention rows).
    if N <= 1024:
        tn = _round_up(N, 8)
        Np = tn
    else:
        tn = 1024
        Np = _round_up(N, tn)

    attn_p = jnp.zeros((Np, Mp), dtype).at[:N, :M].set(attention)
    src_p = jnp.zeros((Mp, Dinp), dtype).at[:M, :Din].set(source)
    w_p = jnp.zeros((Dinp, Doutp), dtype).at[:Din, :Dout].set(weight.T)
    b_p = jnp.zeros((1, Doutp), dtype).at[0, :Dout].set(bias)

    grid = (Np // tn,)

    # Rough VMEM budget: double-buffered attn/out tiles + resident src/W/bias
    # (double-buffered by the pipeline even though their block index is fixed)
    # + fc scratch. Clamp to <= 48 MiB so it also fits v7x's 64 MiB VMEM.
    est = 4 * (2 * (tn * Mp + tn * Doutp)
               + 2 * (Mp * Dinp + Dinp * Doutp + Doutp)
               + Mp * Doutp)
    vmem_limit = int(min(max(est + (4 << 20), 32 << 20), 48 << 20))

    out_p = pl.pallas_call(
        _collect_kernel,
        out_shape=jax.ShapeDtypeStruct((Np, Doutp), dtype),
        grid=grid,
        in_specs=[
            pl.BlockSpec((tn, Mp), lambda i: (i, 0)),       # attention row tile
            pl.BlockSpec((Mp, Dinp), lambda i: (0, 0)),     # source (resident)
            pl.BlockSpec((Dinp, Doutp), lambda i: (0, 0)),  # W^T (resident)
            pl.BlockSpec((1, Doutp), lambda i: (0, 0)),     # bias (resident)
        ],
        out_specs=pl.BlockSpec((tn, Doutp), lambda i: (i, 0)),
        scratch_shapes=[pltpu.VMEM((Mp, Doutp), jnp.float32)],
        compiler_params=pltpu.CompilerParams(
            dimension_semantics=("arbitrary",),
            vmem_limit_bytes=vmem_limit),
    )(attn_p, src_p, w_p, b_p)

    return out_p[:N, :Dout]


class GraphConvolutionLayerCollect:
    """JAX/Pallas port of _GraphConvolutionLayer_Collect (forward pass only)."""

    def __init__(self, dim_obj, dim_rel, key):
        unit_dims = [
            (dim_rel, dim_obj), (dim_rel, dim_obj),
            (dim_obj, dim_rel), (dim_obj, dim_rel),
            (dim_obj, dim_obj), (dim_rel, dim_rel),
        ]
        self.params = []
        for (d_in, d_out) in unit_dims:
            key, wk = jax.random.split(key)
            # normal_init(fc, 0, 0.01): weight ~ N(0, 0.01), bias = 0.
            w = 0.01 * jax.random.normal(wk, (d_out, d_in), jnp.float32)
            b = jnp.zeros((d_out,), jnp.float32)
            self.params.append((w, b))

    def __call__(self, target, source, attention, unit_id):
        w, b = self.params[unit_id]
        # `target` is unused by the reference forward (kept for API parity).
        return collection_unit_forward(source, attention, w, b)


def _reference_forward(source, attention, weight, bias):
    fc = jnp.maximum(source @ weight.T + bias, 0.0)
    collect = attention @ fc
    return collect / (jnp.sum(attention, axis=1, keepdims=True) + 1e-7)


if __name__ == "__main__":
    key = jax.random.PRNGKey(0)
    k_layer, k_t, k_s0, k_a0, k_s2, k_a2 = jax.random.split(key, 6)

    # Small relation-head style shapes (deliberately not 8/128 aligned to
    # exercise the padding path).
    dim_obj, dim_rel = 64, 80
    n_obj, n_rel = 10, 14

    layer = GraphConvolutionLayerCollect(dim_obj, dim_rel, k_layer)

    # unit_id=0: collect from relations into objects (dim_rel -> dim_obj).
    target = jax.random.normal(k_t, (n_obj, dim_obj), dtype=jnp.float32)
    source0 = jax.random.normal(k_s0, (n_rel, dim_rel), dtype=jnp.float32)
    attn0 = jax.random.uniform(k_a0, (n_obj, n_rel), dtype=jnp.float32)

    out0 = layer(target, source0, attn0, 0)
    jax.block_until_ready(out0)
    w0, b0 = layer.params[0]
    ref0 = _reference_forward(source0, attn0, w0, b0)
    assert out0.shape == (n_obj, dim_obj)
    assert jnp.allclose(out0, ref0, atol=1e-5, rtol=2e-2)

    # unit_id=2: collect from objects into relations (dim_obj -> dim_rel).
    source2 = jax.random.normal(k_s2, (n_obj, dim_obj), dtype=jnp.float32)
    attn2 = jax.random.uniform(k_a2, (n_rel, n_obj), dtype=jnp.float32)

    out2 = layer(target, source2, attn2, 2)
    jax.block_until_ready(out2)
    w2, b2 = layer.params[2]
    ref2 = _reference_forward(source2, attn2, w2, b2)
    assert out2.shape == (n_rel, dim_rel)
    assert jnp.allclose(out2, ref2, atol=1e-5, rtol=2e-2)

    print("KERNEL_OK")
</pallas_src>

<mosaic_0001>
module attributes {stable_mosaic.version = 11 : i64} {
  func.func @_collect_kernel(%arg0: i32, %arg1: memref<16x128xf32, #tpu.memory_space<vmem>>, %arg2: memref<128x128xf32, #tpu.memory_space<vmem>>, %arg3: memref<128x128xf32, #tpu.memory_space<vmem>>, %arg4: memref<1x128xf32, #tpu.memory_space<vmem>>, %arg5: memref<16x128xf32, #tpu.memory_space<vmem>>, %arg6: memref<128x128xf32, #tpu.memory_space<vmem>>) attributes {dimension_semantics = [#tpu.dimension_semantics<arbitrary>], iteration_bounds = array<i64: 1>, scalar_prefetch = 0 : i64, scratch_operands = 1 : i64, tpu.core_type = #tpu.core_type<tc>, window_params = [{transform_indices = @transform_0, window_bounds = array<i64: 16, 128>}, {pipeline_mode = #tpu.pipeline_mode<synchronous>, transform_indices = @transform_1, window_bounds = array<i64: 128, 128>}, {pipeline_mode = #tpu.pipeline_mode<synchronous>, transform_indices = @transform_2, window_bounds = array<i64: 128, 128>}, {pipeline_mode = #tpu.pipeline_mode<synchronous>, transform_indices = @transform_3, window_bounds = array<i64: 1, 128>}, {transform_indices = @transform_4, window_bounds = array<i64: 16, 128>}]} {
    %c0_i32 = arith.constant 0 : i32
    %0 = arith.cmpi eq, %arg0, %c0_i32 : i32
    %1 = arith.extui %0 : i1 to i32
    %c0_i32_0 = arith.constant 0 : i32
    %2 = arith.cmpi ne, %1, %c0_i32_0 : i32
    scf.if %2 {
      %c0_8 = arith.constant 0 : index
      %c0_9 = arith.constant 0 : index
      %13 = vector.load %arg2[%c0_8, %c0_9] : memref<128x128xf32, #tpu.memory_space<vmem>>, vector<128x128xf32>
      %c0_10 = arith.constant 0 : index
      %c0_11 = arith.constant 0 : index
      %14 = vector.load %arg3[%c0_10, %c0_11] : memref<128x128xf32, #tpu.memory_space<vmem>>, vector<128x128xf32>
      %cst_12 = arith.constant dense<0.000000e+00> : vector<128x128xf32>
      %15 = tpu.matmul %13, %14, %cst_12 {dimension_numbers = #tpu.dot_dimension_numbers<[1], [0], [0], [1], [0, 0, 1, 1], [], []>} : vector<128x128xf32>, vector<128x128xf32>, vector<128x128xf32> -> vector<128x128xf32>
      %c0_13 = arith.constant 0 : index
      %c0_14 = arith.constant 0 : index
      %16 = vector.load %arg4[%c0_13, %c0_14] : memref<1x128xf32, #tpu.memory_space<vmem>>, vector<1x128xf32>
      %17 = vector.broadcast %16 : vector<1x128xf32> to vector<128x128xf32>
      %18 = arith.addf %15, %17 : vector<128x128xf32>
      %cst_15 = arith.constant 0.000000e+00 : f32
      %19 = vector.broadcast %cst_15 : f32 to vector<128x128xf32>
      %20 = arith.maximumf %18, %19 : vector<128x128xf32>
      %c0_16 = arith.constant 0 : index
      %c0_17 = arith.constant 0 : index
      %21 = vector.load %arg6[%c0_16, %c0_17] : memref<128x128xf32, #tpu.memory_space<vmem>>, vector<128x128xf32>
      tpu.vector_store %arg6[%c0_16, %c0_17], %20 {strides = array<i32>} : memref<128x128xf32, #tpu.memory_space<vmem>>, vector<128x128xf32>,
    } else {
    }
    %c0 = arith.constant 0 : index
    %c0_1 = arith.constant 0 : index
    %3 = vector.load %arg1[%c0, %c0_1] : memref<16x128xf32, #tpu.memory_space<vmem>>, vector<16x128xf32>
    %c0_2 = arith.constant 0 : index
    %c0_3 = arith.constant 0 : index
    %4 = vector.load %arg6[%c0_2, %c0_3] : memref<128x128xf32, #tpu.memory_space<vmem>>, vector<128x128xf32>
    %cst = arith.constant dense<0.000000e+00> : vector<16x128xf32>
    %5 = tpu.matmul %3, %4, %cst {dimension_numbers = #tpu.dot_dimension_numbers<[1], [0], [0], [1], [0, 0, 1, 1], [], []>} : vector<16x128xf32>, vector<128x128xf32>, vector<16x128xf32> -> vector<16x128xf32>
    %cst_4 = arith.constant dense<0.000000e+00> : vector<16xf32>
    %6 = vector.multi_reduction <add>, %3, %cst_4 [1] : vector<16x128xf32> to vector<16xf32>
    %7 = vector.shape_cast %6 : vector<16xf32> to vector<16x1xf32>
    %cst_5 = arith.constant 1.000000e-07 : f32
    %8 = vector.broadcast %cst_5 : f32 to vector<16x1xf32>
    %9 = arith.addf %7, %8 : vector<16x1xf32>
    %10 = vector.broadcast %9 : vector<16x1xf32> to vector<16x128xf32>
    %11 = arith.divf %5, %10 : vector<16x128xf32>
    %c0_6 = arith.constant 0 : index
    %c0_7 = arith.constant 0 : index
    %12 = vector.load %arg5[%c0_6, %c0_7] : memref<16x128xf32, #tpu.memory_space<vmem>>, vector<16x128xf32>
    tpu.vector_store %arg5[%c0_6, %c0_7], %11 {strides = array<i32>} : memref<16x128xf32, #tpu.memory_space<vmem>>, vector<16x128xf32>,
    return
  }
  func.func @transform_0(%arg0: i32) -> (i32, i32) {
    %c0_i32 = arith.constant 0 : i32
    %c0_i32_0 = arith.constant 0 : i32
    return %arg0, %c0_i32 : i32, i32
  }
  func.func @transform_1(%arg0: i32) -> (i32, i32) {
    %c0_i32 = arith.constant 0 : i32
    %c0_i32_0 = arith.constant 0 : i32
    %c0_i32_1 = arith.constant 0 : i32
    return %c0_i32, %c0_i32_0 : i32, i32
  }
  func.func @transform_2(%arg0: i32) -> (i32, i32) {
    %c0_i32 = arith.constant 0 : i32
    %c0_i32_0 = arith.constant 0 : i32
    %c0_i32_1 = arith.constant 0 : i32
    return %c0_i32, %c0_i32_0 : i32, i32
  }
  func.func @transform_3(%arg0: i32) -> (i32, i32) {
    %c0_i32 = arith.constant 0 : i32
    %c0_i32_0 = arith.constant 0 : i32
    %c0_i32_1 = arith.constant 0 : i32
    return %c0_i32, %c0_i32_0 : i32, i32
  }
  func.func @transform_4(%arg0: i32) -> (i32, i32) {
    %c0_i32 = arith.constant 0 : i32
    %c0_i32_0 = arith.constant 0 : i32
    return %arg0, %c0_i32 : i32, i32
  }
}

</mosaic_0001>

<llo_original>
// kernel: tpu_custom_call.1
$region0: #{tpu_custom_call.1}
  #allocation0 [shape = 'u32[]', space=smem, size = 0x4, offset = 0x4, fixed_abs, tag = 'smem constant byte address 0x4 - core index']
  #allocation1 [shape = 'u32[72,128]{1,0:T(1,128)}', space=vmem, size = 0x9000, scoped, tag = 'internal scratch']
  #allocation2 [shape = 'f32[128,128]{1,0:T(8,128)}', space=vmem, size = 0x10000, scoped, tag = 'scratch operand']
  %s0 = inlined_call_operand.hbm [shape: f32[16,128], index: 0, kind: input, shape index: {}]
  %s1 = inlined_call_operand.hbm [shape: f32[128,128], index: 1, kind: input, shape index: {}]
  %s2 = inlined_call_operand.hbm [shape: f32[128,128], index: 2, kind: input, shape index: {}]
  %s3 = inlined_call_operand.vmem [shape: f32[1,128], index: 3, kind: input, shape index: {}]
  %s4 = inlined_call_operand.hbm [shape: f32[16,128], index: 4, kind: output, shape index: {}]
  %s5 = sld [smem:[#allocation0]]
  $region42: #{tpu_custom_call.1} parent=0
    _
  %s7 = ssub.s32 1, %s5
  %s8 = scalar_select 0, %s7, %s5
  $region1: #{tpu_custom_call.1} parent=0
    #allocation3 [shape = 'u8[8192]{0}', space=vmem, size = 0x2000, scoped, tag = 'input window, operand 0, single buffered']
    #allocation4 [shape = 's32[1]{0}', space=sflag, size = 0x4, scoped, tag = 'scoped memory for tpu_custom_call.1']
    #allocation5 [shape = 's32[1]{0}', space=sflag, size = 0x4, scoped, tag = 'scoped memory for tpu_custom_call.1']
    #allocation6 [shape = 'u8[65536]{0}', space=vmem, size = 0x10000, scoped, tag = 'input window, operand 1, single buffered']
    #allocation7 [shape = 's32[1]{0}', space=sflag, size = 0x4, scoped, tag = 'scoped memory for tpu_custom_call.1']
    #allocation8 [shape = 'u8[65536]{0}', space=vmem, size = 0x10000, scoped, tag = 'input window, operand 2, single buffered']
    #allocation9 [shape = 'u8[8192]{0}', space=vmem, size = 0x2000, scoped, tag = 'output window, operand 0, single buffered']
    %9 = vsyncpa [#allocation4], 0
    %10 = vsyncpa [#allocation7], 0
    %11 = vsyncpa [#allocation5], 0
    // Predicated region
    $region2: #{tpu_custom_call.1} parent=1 // pred_check
      _
    $region3: #{tpu_custom_call.1} parent=1 // pred_check_branch
      %13 = sbr.rel (0) target = $region5
    $region4: #{tpu_custom_call.1} parent=1 // pred_region
      %15 = vsyncadd [#allocation4], 0
      %s16 = sshll.u32 %s0, 4
      %s17 = int_to_ptr.hbm [resolvable:$true] %s16
      %s18 = sshll.u32 [#allocation3], 4
      %s19 = int_to_ptr.vmem [resolvable:$true] %s18
      %24 = dma.hbm_to_vmem [thread:$0]  %s17, 256, %s19, [#allocation4], 128, 128, 8
    $region5: #{tpu_custom_call.1} parent=1 // pred_fallthru
      _
    // Predicated region
    $region6: #{tpu_custom_call.1} parent=1 // pred_check
      _
    $region7: #{tpu_custom_call.1} parent=1 // pred_check_branch
      %26 = sbr.rel (0) target = $region9
    $region8: #{tpu_custom_call.1} parent=1 // pred_region
      %28 = vsyncadd [#allocation7], 0
      %s29 = sshll.u32 %s1, 4
      %s30 = int_to_ptr.hbm [resolvable:$true] %s29
      %s31 = sshll.u32 [#allocation6], 4
      %s32 = int_to_ptr.vmem [resolvable:$true] %s31
      %37 = dma.hbm_to_vmem [thread:$0]  %s30, 2048, %s32, [#allocation7], 128, 128, 8
    $region9: #{tpu_custom_call.1} parent=1 // pred_fallthru
      _
    // Predicated region
    $region10: #{tpu_custom_call.1} parent=1 // pred_check
      _
    $region11: #{tpu_custom_call.1} parent=1 // pred_check_branch
      %39 = sbr.rel (0) target = $region13
    $region12: #{tpu_custom_call.1} parent=1 // pred_region
      %41 = vsyncadd [#allocation7], 0
      %s42 = sshll.u32 %s2, 4
      %s43 = int_to_ptr.hbm [resolvable:$true] %s42
      %s44 = sshll.u32 [#allocation8], 4
      %s45 = int_to_ptr.vmem [resolvable:$true] %s44
      %50 = dma.hbm_to_vmem [thread:$0]  %s43, 2048, %s45, [#allocation7], 128, 128, 8
    $region13: #{tpu_custom_call.1} parent=1 // pred_fallthru
      _
    // Predicated region
    $region14: #{tpu_custom_call.1} parent=1 // pred_check
      _
    $region15: #{tpu_custom_call.1} parent=1 // pred_check_branch
      %52 = sbr.rel (0) target = $region17
    $region16: #{tpu_custom_call.1} parent=1 // pred_region
      _
    $region17: #{tpu_custom_call.1} parent=1 // pred_fallthru
      _
    // Predicated region
    $region18: #{tpu_custom_call.1} parent=1 // pred_check
      _
    $region19: #{tpu_custom_call.1} parent=1 // pred_check_branch
      %54 = sbr.rel (0) target = $region21
    $region20: #{tpu_custom_call.1} parent=1 // pred_region
      %56 = dma.done [#allocation4], 256
    $region21: #{tpu_custom_call.1} parent=1 // pred_fallthru
      _
    // Predicated region
    $region22: #{tpu_custom_call.1} parent=1 // pred_check
      _
    $region23: #{tpu_custom_call.1} parent=1 // pred_check_branch
      %58 = sbr.rel (0) target = $region25
    $region24: #{tpu_custom_call.1} parent=1 // pred_region
      %60 = dma.done [#allocation7], 2048
    $region25: #{tpu_custom_call.1} parent=1 // pred_fallthru
      _
    // Predicated region
    $region26: #{tpu_custom_call.1} parent=1 // pred_check
      _
    $region27: #{tpu_custom_call.1} parent=1 // pred_check_branch
      %62 = sbr.rel (0) target = $region29
    $region28: #{tpu_custom_call.1} parent=1 // pred_region
      %64 = dma.done [#allocation7], 2048
    $region29: #{tpu_custom_call.1} parent=1 // pred_fallthru
      _
    %p65 = scmp.eq.s32.totalorder 0, 0
    // Predicated region
    $region30: #{tpu_custom_call.1} parent=1 // pred_check
      %p66 = pneg %p65
    $region31: #{tpu_custom_call.1} parent=1 // pred_check_branch
      %68 = sbr.rel (%p66) target = $region33
    $region32: #{tpu_custom_call.1} parent=1 // pred_region
      %v69 = vld [vmem:[#allocation6] sm:$0xff]
      %v70 = vld [vmem:[#allocation6 + $0x8] sm:$0xff]
      %v71 = vld [vmem:[#allocation6 + $0x10] sm:$0xff]
      %v72 = vld [vmem:[#allocation6 + $0x18] sm:$0xff]
      %v73 = vld [vmem:[#allocation6 + $0x20] sm:$0xff]
      %v74 = vld [vmem:[#allocation6 + $0x28] sm:$0xff]
      %v75 = vld [vmem:[#allocation6 + $0x30] sm:$0xff]
      %v76 = vld [vmem:[#allocation6 + $0x38] sm:$0xff]
      %v77 = vld [vmem:[#allocation6 + $0x40] sm:$0xff]
      %v78 = vld [vmem:[#allocation6 + $0x48] sm:$0xff]
      %v79 = vld [vmem:[#allocation6 + $0x50] sm:$0xff]
      %v80 = vld [vmem:[#allocation6 + $0x58] sm:$0xff]
      %v81 = vld [vmem:[#allocation6 + $0x60] sm:$0xff]
      %v82 = vld [vmem:[#allocation6 + $0x68] sm:$0xff]
      %v83 = vld [vmem:[#allocation6 + $0x70] sm:$0xff]
      %v84 = vld [vmem:[#allocation6 + $0x78] sm:$0xff]
      %v85 = vld [vmem:[#allocation8] sm:$0xff]
      %v86 = vld [vmem:[#allocation8 + $0x8] sm:$0xff]
      %v87 = vld [vmem:[#allocation8 + $0x10] sm:$0xff]
      %v88 = vld [vmem:[#allocation8 + $0x18] sm:$0xff]
      %v89 = vld [vmem:[#allocation8 + $0x20] sm:$0xff]
      %v90 = vld [vmem:[#allocation8 + $0x28] sm:$0xff]
      %v91 = vld [vmem:[#allocation8 + $0x30] sm:$0xff]
      %v92 = vld [vmem:[#allocation8 + $0x38] sm:$0xff]
      %v93 = vld [vmem:[#allocation8 + $0x40] sm:$0xff]
      %v94 = vld [vmem:[#allocation8 + $0x48] sm:$0xff]
      %v95 = vld [vmem:[#allocation8 + $0x50] sm:$0xff]
      %v96 = vld [vmem:[#allocation8 + $0x58] sm:$0xff]
      %v97 = vld [vmem:[#allocation8 + $0x60] sm:$0xff]
      %v98 = vld [vmem:[#allocation8 + $0x68] sm:$0xff]
      %v99 = vld [vmem:[#allocation8 + $0x70] sm:$0xff]
      %v100 = vld [vmem:[#allocation8 + $0x78] sm:$0xff]
      %v101 = vld [vmem:[%s3] sm:$0x1]
      %v103 = vperm.slane %v101, 0
      %105 = vmatpush.msra.mxu0 %v100
      %106 = vmatpush.msra.mxu0 %v99
      %107 = vmatpush.msra.mxu0 %v98
      %108 = vmatpush.msra.mxu0 %v97
      %109 = vmatpush.msra.mxu0 %v96
      %110 = vmatpush.msra.mxu0 %v95
      %111 = vmatpush.msra.mxu0 %v94
      %112 = vmatpush.msra.mxu0 %v93
      %113 = vmatpush.msra.mxu0 %v92
      %114 = vmatpush.msra.mxu0 %v91
      %115 = vmatpush.msra.mxu0 %v90
      %116 = vmatpush.msra.mxu0 %v89
      %117 = vmatpush.msra.mxu0 %v88
      %118 = vmatpush.msra.mxu0 %v87
      %119 = vmatpush.msra.mxu0 %v86
      %120 = vmatpush.msra.mxu0 %v85
      %121 = vmatmul.f32.gmra.mxu0 %v69
      %v122 = vpop.f32.mrf.mxu0
      %v123 = vadd.f32 %v103, %v122
      %124 = vmatmul.f32.gmra.mxu0 %v70
      %v125 = vpop.f32.mrf.mxu0
      %v126 = vadd.f32 %v103, %v125
      %127 = vmatmul.f32.gmra.mxu0 %v71
      %v128 = vpop.f32.mrf.mxu0
      %v129 = vadd.f32 %v103, %v128
      %130 = vmatmul.f32.gmra.mxu0 %v72
      %v131 = vpop.f32.mrf.mxu0
      %v132 = vadd.f32 %v103, %v131
      %133 = vmatmul.f32.gmra.mxu0 %v73
      %v134 = vpop.f32.mrf.mxu0
      %v135 = vadd.f32 %v103, %v134
      %136 = vmatmul.f32.gmra.mxu0 %v74
      %v137 = vpop.f32.mrf.mxu0
      %v138 = vadd.f32 %v103, %v137
      %139 = vmatmul.f32.gmra.mxu0 %v75
      %v140 = vpop.f32.mrf.mxu0
      %v141 = vadd.f32 %v103, %v140
      %142 = vmatmul.f32.gmra.mxu0 %v76
      %v143 = vpop.f32.mrf.mxu0
      %v144 = vadd.f32 %v103, %v143
      %145 = vmatmul.f32.gmra.mxu0 %v77
      %v146 = vpop.f32.mrf.mxu0
      %v147 = vadd.f32 %v103, %v146
      %148 = vmatmul.f32.gmra.mxu0 %v78
      %v149 = vpop.f32.mrf.mxu0
      %v150 = vadd.f32 %v103, %v149
      %151 = vmatmul.f32.gmra.mxu0 %v79
      %v152 = vpop.f32.mrf.mxu0
      %v153 = vadd.f32 %v103, %v152
      %154 = vmatmul.f32.gmra.mxu0 %v80
      %v155 = vpop.f32.mrf.mxu0
      %v156 = vadd.f32 %v103, %v155
      %157 = vmatmul.f32.gmra.mxu0 %v81
      %v158 = vpop.f32.mrf.mxu0
      %v159 = vadd.f32 %v103, %v158
      %160 = vmatmul.f32.gmra.mxu0 %v82
      %v161 = vpop.f32.mrf.mxu0
      %v162 = vadd.f32 %v103, %v161
      %163 = vmatmul.f32.gmra.mxu0 %v83
      %v164 = vpop.f32.mrf.mxu0
      %v165 = vadd.f32 %v103, %v164
      %166 = vmatmul.f32.gmra.mxu0 %v84
      %v167 = vpop.f32.mrf.mxu0
      %v168 = vadd.f32 %v103, %v167
      %169 = vdwg.mxu0
      %v170 = vmax.f32 %v123, 0.0
      %v171 = vmax.f32 %v126, 0.0
      %v172 = vmax.f32 %v129, 0.0
      %v173 = vmax.f32 %v132, 0.0
      %v174 = vmax.f32 %v135, 0.0
      %v175 = vmax.f32 %v138, 0.0
      %v176 = vmax.f32 %v141, 0.0
      %v177 = vmax.f32 %v144, 0.0
      %v178 = vmax.f32 %v147, 0.0
      %v179 = vmax.f32 %v150, 0.0
      %v180 = vmax.f32 %v153, 0.0
      %v181 = vmax.f32 %v156, 0.0
      %v182 = vmax.f32 %v159, 0.0
      %v183 = vmax.f32 %v162, 0.0
      %v184 = vmax.f32 %v165, 0.0
      %v185 = vmax.f32 %v168, 0.0
      %186 = vst [vmem:[#allocation2] sm:$0xff] %v170
      %187 = vst [vmem:[#allocation2 + $0x8] sm:$0xff] %v171
      %188 = vst [vmem:[#allocation2 + $0x10] sm:$0xff] %v172
      %189 = vst [vmem:[#allocation2 + $0x18] sm:$0xff] %v173
      %190 = vst [vmem:[#allocation2 + $0x20] sm:$0xff] %v174
      %191 = vst [vmem:[#allocation2 + $0x28] sm:$0xff] %v175
      %192 = vst [vmem:[#allocation2 + $0x30] sm:$0xff] %v176
      %193 = vst [vmem:[#allocation2 + $0x38] sm:$0xff] %v177
      %194 = vst [vmem:[#allocation2 + $0x40] sm:$0xff] %v178
      %195 = vst [vmem:[#allocation2 + $0x48] sm:$0xff] %v179
      %196 = vst [vmem:[#allocation2 + $0x50] sm:$0xff] %v180
      %197 = vst [vmem:[#allocation2 + $0x58] sm:$0xff] %v181
      %198 = vst [vmem:[#allocation2 + $0x60] sm:$0xff] %v182
      %199 = vst [vmem:[#allocation2 + $0x68] sm:$0xff] %v183
      %200 = vst [vmem:[#allocation2 + $0x70] sm:$0xff] %v184
      %201 = vst [vmem:[#allocation2 + $0x78] sm:$0xff] %v185
    $region33: #{tpu_custom_call.1} parent=1 // pred_fallthru
      _
    %v202 = vld [vmem:[#allocation3] sm:$0xff]
    %v203 = vld [vmem:[#allocation3 + $0x8] sm:$0xff]
    %v204 = vld [vmem:[#allocation2] sm:$0xff]
    %v205 = vld [vmem:[#allocation2 + $0x8] sm:$0xff]
    %v206 = vld [vmem:[#allocation2 + $0x10] sm:$0xff]
    %v207 = vld [vmem:[#allocation2 + $0x18] sm:$0xff]
    %v208 = vld [vmem:[#allocation2 + $0x20] sm:$0xff]
    %v209 = vld [vmem:[#allocation2 + $0x28] sm:$0xff]
    %v210 = vld [vmem:[#allocation2 + $0x30] sm:$0xff]
    %v211 = vld [vmem:[#allocation2 + $0x38] sm:$0xff]
    %v212 = vld [vmem:[#allocation2 + $0x40] sm:$0xff]
    %v213 = vld [vmem:[#allocation2 + $0x48] sm:$0xff]
    %v214 = vld [vmem:[#allocation2 + $0x50] sm:$0xff]
    %v215 = vld [vmem:[#allocation2 + $0x58] sm:$0xff]
    %v216 = vld [vmem:[#allocation2 + $0x60] sm:$0xff]
    %v217 = vld [vmem:[#allocation2 + $0x68] sm:$0xff]
    %v218 = vld [vmem:[#allocation2 + $0x70] sm:$0xff]
    %v219 = vld [vmem:[#allocation2 + $0x78] sm:$0xff]
    %220 = vmatpush.msra.mxu0 %v219
    %221 = vmatpush.msra.mxu0 %v218
    %222 = vmatpush.msra.mxu0 %v217
    %223 = vmatpush.msra.mxu0 %v216
    %224 = vmatpush.msra.mxu0 %v215
    %225 = vmatpush.msra.mxu0 %v214
    %226 = vmatpush.msra.mxu0 %v213
    %227 = vmatpush.msra.mxu0 %v212
    %228 = vmatpush.msra.mxu0 %v211
    %229 = vmatpush.msra.mxu0 %v210
    %230 = vmatpush.msra.mxu0 %v209
    %231 = vmatpush.msra.mxu0 %v208
    %232 = vmatpush.msra.mxu0 %v207
    %233 = vmatpush.msra.mxu0 %v206
    %234 = vmatpush.msra.mxu0 %v205
    %235 = vmatpush.msra.mxu0 %v204
    %236 = vmatmul.f32.gmra.mxu0 %v202
    %v237 = vpop.f32.mrf.mxu0
    %v238 = vadd.f32 0.0, %v237
    %239 = vmatmul.f32.gmra.mxu0 %v203
    %v240 = vpop.f32.mrf.mxu0
    %v241 = vadd.f32 0.0, %v240
    %242 = vdwg.mxu0
    %243 = vadd.xlane.f32.xlu0 %v202
    %v244 = vpop.xlane.xlu0 %243
    %245 = vadd.xlane.f32.xlu0 %v203
    %v246 = vpop.xlane.xlu0 %245
    %v247 = vadd.f32 %v244, 1e-07
    %v248 = vadd.f32 %v246, 1e-07
    %v249 = vrcp.pop %v247
    %v250 = vmul.f32 %v247, %v249
    %v251 = vsub.f32 1.0, %v250
    %v252 = vmul.f32 %v249, %v251
    %v253 = vadd.f32 %v249, %v252
    %vm254 = vweird.f32 %v247
    %vm255 = vweird.f32 %v249
    %vm256 = vmor %vm254, %vm255
    %v257 = vsel %vm256, %v249, %v253
    %v258 = vand.u32 2147483647, %v247
    %vm259 = vcmp.eq.f32.partialorder %v258, 8.507059e+37
    %v260 = vand.u32 %v247, 2147483648
    %v261 = vor.u32 1.1754944e-38, %v260
    %v262 = vsel %vm259, %v261, %v257
    %v263 = vmul.f32 %v238, %v262
    %v264 = vrcp.pop %v248
    %v265 = vmul.f32 %v248, %v264
    %v266 = vsub.f32 1.0, %v265
    %v267 = vmul.f32 %v264, %v266
    %v268 = vadd.f32 %v264, %v267
    %vm269 = vweird.f32 %v248
    %vm270 = vweird.f32 %v264
    %vm271 = vmor %vm269, %vm270
    %v272 = vsel %vm271, %v264, %v268
    %v273 = vand.u32 2147483647, %v248
    %vm274 = vcmp.eq.f32.partialorder %v273, 8.507059e+37
    %v275 = vand.u32 %v248, 2147483648
    %v276 = vor.u32 1.1754944e-38, %v275
    %v277 = vsel %vm274, %v276, %v272
    %v278 = vmul.f32 %v241, %v277
    %279 = vst [vmem:[#allocation9] sm:$0xff] %v263
    %280 = vst [vmem:[#allocation9 + $0x8] sm:$0xff] %v278
    // Predicated region
    $region34: #{tpu_custom_call.1} parent=1 // pred_check
      _
    $region35: #{tpu_custom_call.1} parent=1 // pred_check_branch
      %282 = sbr.rel (0) target = $region37
    $region36: #{tpu_custom_call.1} parent=1 // pred_region
      %284 = vsyncadd [#allocation5], 0
      %s285 = sshll.u32 [#allocation9], 4
      %s286 = int_to_ptr.vmem [resolvable:$true] %s285
      %s287 = sshll.u32 %s4, 4
      %s288 = int_to_ptr.hbm [resolvable:$true] %s287
      %293 = dma.vmem_to_hbm [thread:$0]  %s286, 256, %s288, [#allocation5], 128, 128, 8
    $region37: #{tpu_custom_call.1} parent=1 // pred_fallthru
      _
    // Predicated region
    $region38: #{tpu_custom_call.1} parent=1 // pred_check
      _
    $region39: #{tpu_custom_call.1} parent=1 // pred_check_branch
      %295 = sbr.rel (0) target = $region41
    $region40: #{tpu_custom_call.1} parent=1 // pred_region
      %297 = dma.done [#allocation5], 256
    $region41: #{tpu_custom_call.1} parent=1 // pred_fallthru
      _
    %298 = vsyncpa [#allocation4], 1
    %299 = vsyncpa [#allocation7], 1
    %300 = vsyncpa [#allocation5], 1

</llo_original>
